<compile_context>
chip_gen: v7x
topology: tpu7x:2x2x1
jax: 0.10.0
libtpu: 0.0.40
codegen_flags: <defaults>
</compile_context>

<pallas_src>
import functools

import numpy as np
import jax
import jax.numpy as jnp
from jax import lax
from jax.experimental import pallas as pl
from jax.experimental.pallas import tpu as pltpu


_MXU_PRECISION = lax.Precision.HIGHEST  # full f32 accuracy on the MXU


# ---------------------------------------------------------------------------
# Trig bases (expk0 / expk1 equivalents): generated in f64, cached on device
# keyed by (N, dtype) so repeated calls never re-upload from host.
# ---------------------------------------------------------------------------
@functools.lru_cache(maxsize=None)
def _idxst_basis_host(N):
    # S1[q, v] = sin(pi * q * (2v+1) / (2N))   (right-multiply: last-axis IDXST)
    q = np.arange(N, dtype=np.float64)[:, None]
    v = np.arange(N, dtype=np.float64)[None, :]
    return np.sin(np.pi * q * (2.0 * v + 1.0) / (2.0 * N)).astype(np.float32)


@functools.lru_cache(maxsize=None)
def _idxct_basis_T_host(N):
    # Ct0[u, p] = cos(pi * p * (2u+1) / (2N))  (left-multiply: dim -2 IDXCT)
    u = np.arange(N, dtype=np.float64)[:, None]
    p = np.arange(N, dtype=np.float64)[None, :]
    return np.cos(np.pi * p * (2.0 * u + 1.0) / (2.0 * N)).astype(np.float32)


@functools.lru_cache(maxsize=None)
def _s1_basis(N, dtype_name):
    return jnp.asarray(_idxst_basis_host(N), dtype=jnp.dtype(dtype_name))


@functools.lru_cache(maxsize=None)
def _ct0_basis(N, dtype_name):
    return jnp.asarray(_idxct_basis_T_host(N), dtype=jnp.dtype(dtype_name))


# ---------------------------------------------------------------------------
# Per-generation VMEM planning (v7x = 64 MiB physical, v5e/v6e = 128 MiB).
# ---------------------------------------------------------------------------
_DEFAULT_VMEM = 64 * 1024 * 1024  # conservative default (v7x)


@functools.lru_cache(maxsize=None)
def _vmem_plan():
    cap = _DEFAULT_VMEM
    try:
        info = pltpu.get_tpu_info()
        cap = int(getattr(info, "vmem_capacity_bytes", _DEFAULT_VMEM)) or _DEFAULT_VMEM
    except Exception:
        cap = _DEFAULT_VMEM
    budget = int(cap * 0.70)  # planning budget for resident operands + tiles
    limit = int(cap * 0.85)   # scoped-VMEM limit handed to Mosaic
    return budget, limit


# ---------------------------------------------------------------------------
# Tile helpers (ragged edges handled by pl.cdiv grids; full-dim blocks only
# when the dim itself is the candidate).
# ---------------------------------------------------------------------------
def _clamp_tile(dim, pref, align):
    if dim <= pref:
        return dim                       # full-dim block is always legal
    return max(align, (pref // align) * align)


def _dedup(xs):
    out = []
    for x in xs:
        if x not in out:
            out.append(x)
    return out


def _fused_tn(N0, N1, d, od, budget):
    """Output column tile for the fused kernel, or None if it cannot fit."""
    cands = [N1] if N1 <= 512 else [512, 256, 128]
    for tn in cands:
        need = (2 * N0 * N1 * d      # x[b] block (double-buffered)
                + 2 * N1 * tn * d    # S1 column tile
                + 2 * N0 * N0 * d    # Ct0 (resident; budget 2 buffers anyway)
                + 2 * N0 * tn * od   # output tile
                + 2 * N0 * tn * 4)   # f32 intermediates (z + result)
        if need <= budget:
            return tn
    return None


def _pick_mn_fullk(M, N, K, d, od, budget, m_align, prefer_rows):
    """(tm, tn) for a full-K matmul block plan under the VMEM budget."""
    def need(tm, tn):
        return 2 * (tm * K * d + K * tn * d + tm * tn * od) + 2 * tm * tn * 4

    tm_cands = _dedup([_clamp_tile(M, p, m_align)
                       for p in (2048, 1024, 512, 256, 128)])
    tn_cands = _dedup([_clamp_tile(N, p, 128)
                       for p in (N, 2048, 1024, 512, 256, 128)])
    if prefer_rows:   # maximize the row tile first (pass 2: shrink gi)
        pairs = [(tm, tn) for tm in tm_cands for tn in tn_cands]
    else:             # maximize the column tile first (pass 1: basis residency)
        pairs = [(tm, tn) for tn in tn_cands for tm in tm_cands]
    for tm, tn in pairs:
        if need(tm, tn) <= budget:
            return tm, tn
    return tm_cands[-1], tn_cands[-1]


# ---------------------------------------------------------------------------
# Fused kernel: per batch image, both matmuls stay in VMEM.
# ---------------------------------------------------------------------------
def _fused_kernel(x_ref, s1_ref, ct0_ref, o_ref):
    # z[p, v] = sum_q x[p, q] * S1[q, v]          (IDXST along the last axis)
    z = jnp.dot(x_ref[...], s1_ref[...],
                preferred_element_type=jnp.float32, precision=_MXU_PRECISION)
    # out[u, v] = sum_p Ct0[u, p] * z[p, v]       (IDXCT along dim -2)
    res = jnp.dot(ct0_ref[...], z.astype(ct0_ref.dtype),
                  preferred_element_type=jnp.float32, precision=_MXU_PRECISION)
    o_ref[...] = res.astype(o_ref.dtype)


def _fused_idcst2(xb, S1, Ct0, out_dtype, tn, vmem_limit):
    B, N0, N1 = xb.shape
    d = xb.dtype.itemsize
    od = jnp.dtype(out_dtype).itemsize
    gj = pl.cdiv(N1, tn)
    cost = pl.CostEstimate(
        flops=int(2 * B * N0 * N1 * N1 + 2 * B * N0 * N0 * N1),
        transcendentals=0,
        bytes_accessed=int(d * (B * N0 * N1 + N1 * N1 + N0 * N0)
                           + od * B * N0 * N1),
    )
    return pl.pallas_call(
        _fused_kernel,
        out_shape=jax.ShapeDtypeStruct((B, N0, N1), out_dtype),
        grid_spec=pltpu.PrefetchScalarGridSpec(
            num_scalar_prefetch=0,
            grid=(B, gj),
            in_specs=[
                # x[b] is constant across j -> DMA'd exactly once per batch.
                pl.BlockSpec((None, N0, N1), lambda b, j: (b, 0, 0)),
                # S1 column tile; Ct0 has a constant index -> one DMA total.
                pl.BlockSpec((N1, tn), lambda b, j: (0, j)),
                pl.BlockSpec((N0, N0), lambda b, j: (0, 0)),
            ],
            out_specs=pl.BlockSpec((None, N0, tn), lambda b, j: (b, 0, j)),
        ),
        compiler_params=pltpu.CompilerParams(
            dimension_semantics=("parallel", "parallel"),
            vmem_limit_bytes=vmem_limit,
        ),
        cost_estimate=cost,
    )(xb, S1, Ct0)


# ---------------------------------------------------------------------------
# Two-pass fallback (very large N only): full-K blocks -> no reduction grid,
# no accumulator scratch, direct writes.
# ---------------------------------------------------------------------------
def _matmul_fullk_kernel(a_ref, b_ref, o_ref):
    o_ref[...] = jnp.dot(a_ref[...], b_ref[...],
                         preferred_element_type=jnp.float32,
                         precision=_MXU_PRECISION).astype(o_ref.dtype)


def _pass1_idxst(x2d, basis, out_dtype, budget, vmem_limit, m_align):
    """z = x2d @ basis   (x2d: [M, K], basis: [K, N])."""
    M, K = x2d.shape
    _, N = basis.shape
    d = x2d.dtype.itemsize
    od = jnp.dtype(out_dtype).itemsize
    tm, tn = _pick_mn_fullk(M, N, K, d, od, budget, m_align, prefer_rows=False)
    gm, gn = pl.cdiv(M, tm), pl.cdiv(N, tn)
    cost = pl.CostEstimate(
        flops=int(2 * M * N * K), transcendentals=0,
        bytes_accessed=int(d * (gn * M * K + K * N) + od * M * N))
    return pl.pallas_call(
        _matmul_fullk_kernel,
        out_shape=jax.ShapeDtypeStruct((M, N), out_dtype),
        grid_spec=pltpu.PrefetchScalarGridSpec(
            num_scalar_prefetch=0,
            # i innermost: basis column block is resident across the inner loop.
            grid=(gn, gm),
            in_specs=[
                pl.BlockSpec((tm, K), lambda j, i: (i, 0)),
                pl.BlockSpec((K, tn), lambda j, i: (0, j)),
            ],
            out_specs=pl.BlockSpec((tm, tn), lambda j, i: (i, j)),
        ),
        compiler_params=pltpu.CompilerParams(
            dimension_semantics=("parallel", "parallel"),
            vmem_limit_bytes=vmem_limit,
        ),
        cost_estimate=cost,
    )(x2d, basis)


def _pass2_idxct(Ct0, z3d, out_dtype, budget, vmem_limit, m_align):
    """out[b] = Ct0 @ z[b]   (Ct0: [P, K], z: [B, K, N])."""
    P, K = Ct0.shape
    B, _, N = z3d.shape
    d = Ct0.dtype.itemsize
    od = jnp.dtype(out_dtype).itemsize
    tm, tn = _pick_mn_fullk(P, N, K, d, od, budget, m_align, prefer_rows=True)
    gi, gj = pl.cdiv(P, tm), pl.cdiv(N, tn)
    cost = pl.CostEstimate(
        flops=int(2 * B * P * N * K), transcendentals=0,
        bytes_accessed=int(d * (B * P * K + B * gi * K * N) + od * B * P * N))
    return pl.pallas_call(
        _matmul_fullk_kernel,
        out_shape=jax.ShapeDtypeStruct((B, P, N), out_dtype),
        grid_spec=pltpu.PrefetchScalarGridSpec(
            num_scalar_prefetch=0,
            # j innermost: the Ct0 row block is resident across the inner loop.
            grid=(B, gi, gj),
            in_specs=[
                pl.BlockSpec((tm, K), lambda b, i, j: (i, 0)),
                pl.BlockSpec((None, K, tn), lambda b, i, j: (b, 0, j)),
            ],
            out_specs=pl.BlockSpec((None, tm, tn), lambda b, i, j: (b, i, j)),
        ),
        compiler_params=pltpu.CompilerParams(
            dimension_semantics=("parallel", "parallel", "parallel"),
            vmem_limit_bytes=vmem_limit,
        ),
        cost_estimate=cost,
    )(Ct0, z3d)


# ---------------------------------------------------------------------------
# Public op: IDCST2 over the last two axes of x (leading axes are batch).
# ---------------------------------------------------------------------------
def idcst2(x, *, use_bf16=False):
    """out = idxct(idxst(x)^T)^T applied to the last two axes of x."""
    assert x.ndim >= 2, "idcst2 needs at least 2 dims"
    orig_shape = x.shape
    orig_dtype = x.dtype
    N0, N1 = x.shape[-2], x.shape[-1]
    B = int(np.prod(x.shape[:-2])) if x.ndim > 2 else 1

    compute_dtype = jnp.bfloat16 if use_bf16 else jnp.float32
    dtype_name = jnp.dtype(compute_dtype).name
    S1 = _s1_basis(N1, dtype_name)     # [N1, N1]
    Ct0 = _ct0_basis(N0, dtype_name)   # [N0, N0]
    xb = x.reshape(B, N0, N1).astype(compute_dtype)

    budget, vmem_limit = _vmem_plan()
    d = jnp.dtype(compute_dtype).itemsize
    od = jnp.dtype(orig_dtype).itemsize
    m_align = 16 if use_bf16 else 8

    tn = _fused_tn(N0, N1, d, od, budget)
    if tn is not None:
        out = _fused_idcst2(xb, S1, Ct0, orig_dtype, tn, vmem_limit)
    else:
        # Very large N0*N1: two passes (intermediate makes one HBM round trip).
        z = _pass1_idxst(xb.reshape(B * N0, N1), S1, compute_dtype,
                         budget, vmem_limit, m_align)
        out = _pass2_idxct(Ct0, z.reshape(B, N0, N1), orig_dtype,
                           budget, vmem_limit, m_align)
    return out.reshape(orig_shape)


if __name__ == "__main__":
    key = jax.random.PRNGKey(0)
    x = jax.random.normal(key, (2, 4, 16, 16), dtype=jnp.float32)

    y = jax.block_until_ready(jax.jit(idcst2)(x))

    # Closed-form float64 reference:
    #   ref[..., u, v] = sum_{p,q} x[..., p, q]
    #                    * cos(pi*p*(2u+1)/(2*N0)) * sin(pi*q*(2v+1)/(2*N1))
    N0, N1 = x.shape[-2], x.shape[-1]
    p = np.arange(N0, dtype=np.float64)[:, None]
    u = np.arange(N0, dtype=np.float64)[None, :]
    C0 = np.cos(np.pi * p * (2.0 * u + 1.0) / (2.0 * N0))
    q = np.arange(N1, dtype=np.float64)[:, None]
    v = np.arange(N1, dtype=np.float64)[None, :]
    S1 = np.sin(np.pi * q * (2.0 * v + 1.0) / (2.0 * N1))
    xn = np.asarray(x, dtype=np.float64)
    ref = np.einsum("...pq,pu,qv->...uv", xn, C0, S1)

    np.testing.assert_allclose(
        np.asarray(y), ref.astype(np.float32), rtol=1e-4, atol=1e-4
    )

    print("KERNEL_OK")
</pallas_src>

<mosaic_0001>
module attributes {stable_mosaic.version = 11 : i64} {
  func.func @_fused_kernel(%arg0: i32, %arg1: i32, %arg2: memref<1x16x16xf32, #tpu.memory_space<vmem>>, %arg3: memref<16x16xf32, #tpu.memory_space<vmem>>, %arg4: memref<16x16xf32, #tpu.memory_space<vmem>>, %arg5: memref<1x16x16xf32, #tpu.memory_space<vmem>>) attributes {dimension_semantics = [#tpu.dimension_semantics<parallel>, #tpu.dimension_semantics<parallel>], iteration_bounds = array<i64: 8, 1>, scalar_prefetch = 0 : i64, scratch_operands = 0 : i64, tpu.core_type = #tpu.core_type<tc>, window_params = [{transform_indices = @transform_0, window_bounds = array<i64: 1, 16, 16>}, {transform_indices = @transform_1, window_bounds = array<i64: 16, 16>}, {pipeline_mode = #tpu.pipeline_mode<synchronous>, transform_indices = @transform_2, window_bounds = array<i64: 16, 16>}, {transform_indices = @transform_3, window_bounds = array<i64: 1, 16, 16>}]} {
    %c0 = arith.constant 0 : index
    %c0_0 = arith.constant 0 : index
    %c0_1 = arith.constant 0 : index
    %0 = vector.load %arg2[%c0, %c0_0, %c0_1] : memref<1x16x16xf32, #tpu.memory_space<vmem>>, vector<1x16x16xf32>
    %1 = vector.shape_cast %0 : vector<1x16x16xf32> to vector<16x16xf32>
    %c0_2 = arith.constant 0 : index
    %c0_3 = arith.constant 0 : index
    %2 = vector.load %arg3[%c0_2, %c0_3] : memref<16x16xf32, #tpu.memory_space<vmem>>, vector<16x16xf32>
    %cst = arith.constant dense<0.000000e+00> : vector<16x16xf32>
    %3 = tpu.matmul %1, %2, %cst {dimension_numbers = #tpu.dot_dimension_numbers<[1], [0], [0], [1], [0, 0, 1, 1], [], []>, precision = #tpu.contract_precision<fp32>} : vector<16x16xf32>, vector<16x16xf32>, vector<16x16xf32> -> vector<16x16xf32>
    %c0_4 = arith.constant 0 : index
    %c0_5 = arith.constant 0 : index
    %4 = vector.load %arg4[%c0_4, %c0_5] : memref<16x16xf32, #tpu.memory_space<vmem>>, vector<16x16xf32>
    %cst_6 = arith.constant dense<0.000000e+00> : vector<16x16xf32>
    %5 = tpu.matmul %4, %3, %cst_6 {dimension_numbers = #tpu.dot_dimension_numbers<[1], [0], [0], [1], [0, 0, 1, 1], [], []>, precision = #tpu.contract_precision<fp32>} : vector<16x16xf32>, vector<16x16xf32>, vector<16x16xf32> -> vector<16x16xf32>
    %c0_7 = arith.constant 0 : index
    %c0_8 = arith.constant 0 : index
    %c0_9 = arith.constant 0 : index
    %6 = vector.load %arg5[%c0_7, %c0_8, %c0_9] : memref<1x16x16xf32, #tpu.memory_space<vmem>>, vector<1x16x16xf32>
    %7 = vector.shape_cast %6 : vector<1x16x16xf32> to vector<16x16xf32>
    %8 = vector.shape_cast %5 : vector<16x16xf32> to vector<1x16x16xf32>
    tpu.vector_store %arg5[%c0_7, %c0_8, %c0_9], %8 {strides = array<i32>} : memref<1x16x16xf32, #tpu.memory_space<vmem>>, vector<1x16x16xf32>,
    return
  }
  func.func @transform_0(%arg0: i32, %arg1: i32) -> (i32, i32, i32) {
    %c0_i32 = arith.constant 0 : i32
    %c0_i32_0 = arith.constant 0 : i32
    %c0_i32_1 = arith.constant 0 : i32
    return %arg0, %c0_i32, %c0_i32_0 : i32, i32, i32
  }
  func.func @transform_1(%arg0: i32, %arg1: i32) -> (i32, i32) {
    %c0_i32 = arith.constant 0 : i32
    %c0_i32_0 = arith.constant 0 : i32
    return %c0_i32, %arg1 : i32, i32
  }
  func.func @transform_2(%arg0: i32, %arg1: i32) -> (i32, i32) {
    %c0_i32 = arith.constant 0 : i32
    %c0_i32_0 = arith.constant 0 : i32
    %c0_i32_1 = arith.constant 0 : i32
    return %c0_i32, %c0_i32_0 : i32, i32
  }
  func.func @transform_3(%arg0: i32, %arg1: i32) -> (i32, i32, i32) {
    %c0_i32 = arith.constant 0 : i32
    %c0_i32_0 = arith.constant 0 : i32
    return %arg0, %c0_i32, %arg1 : i32, i32, i32
  }
}

</mosaic_0001>

<llo_original>
// kernel: idcst2.1
$region0: #{idcst2.1}
  #allocation0 [shape = 'u32[]', space=smem, size = 0x4, offset = 0x4, fixed_abs, tag = 'smem constant byte address 0x4 - core index']
  #allocation1 [shape = 'u32[144,128]{1,0:T(1,128)}', space=vmem, size = 0x12000, scoped, tag = 'internal scratch']
  %s0 = inlined_call_operand.hbm [shape: f32[8,16,16], index: 0, kind: input, shape index: {}]
  %s1 = inlined_call_operand.hbm [shape: f32[16,16], index: 1, kind: input, shape index: {}]
  %s2 = inlined_call_operand.hbm [shape: f32[16,16], index: 2, kind: input, shape index: {}]
  %s3 = inlined_call_operand.hbm [shape: f32[8,16,16], index: 3, kind: output, shape index: {}]
  %s4 = sld [smem:[#allocation0]]
  $region57: #{idcst2.1} parent=0
    _
  %s6 = ssub.s32 1, %s4
  %s7 = scalar_select 0, %s6, %s4
  $region1: #{idcst2.1} parent=0
    #allocation2 [shape = 'u8[16384]{0}', space=vmem, size = 0x4000, scoped, tag = 'input window, operand 0']
    #allocation3 [shape = 's32[2]{0}', space=sflag, size = 0x8, scoped, tag = 'scoped memory for idcst2.1']
    #allocation4 [shape = 's32[2]{0}', space=sflag, size = 0x8, scoped, tag = 'scoped memory for idcst2.1']
    #allocation5 [shape = 'u8[8192]{0}', space=vmem, size = 0x2000, scoped, tag = 'input window, operand 1, single buffered']
    #allocation6 [shape = 's32[1]{0}', space=sflag, size = 0x4, scoped, tag = 'scoped memory for idcst2.1']
    #allocation7 [shape = 'u8[8192]{0}', space=vmem, size = 0x2000, scoped, tag = 'input window, operand 2, single buffered']
    #allocation8 [shape = 'u8[16384]{0}', space=vmem, size = 0x4000, scoped, tag = 'output window, operand 0']
    %8 = vsyncpa [#allocation3], 0
    %s9 = scalar_lea.sflag [#allocation3], 1
    %10 = vsyncpa %s9, 0
    %11 = vsyncpa [#allocation6], 0
    %12 = vsyncpa [#allocation4], 0
    %s13 = scalar_lea.sflag [#allocation4], 1
    %14 = vsyncpa %s13, 0
    loop: start=0, step=1, limit=10
    $region2: #{idcst2.1} parent=1 // loop_pre_header
      _
    $region3: #{idcst2.1} parent=1 // loop_header
      %s16 = sphi 0, %s20
      %p17 = scmp.ge.s32.totalorder %s16, 10
      %s23 = sphi 0, %s35
      %s24 = sphi 0, %s31
      %s25 = sphi 0, %s23
      %s26 = sphi 0, %s24
      %s27 = sphi 0, %s25
      %s28 = sphi 0, %s26
      %s38 = sphi 0, %s40
      %s41 = sphi 0, %s38
      %s42 = sphi 0, %s41
      %s58 = sphi 0, %s42
      %s64 = sphi 0, %s66
      %s67 = sphi 0, %s64
      %s68 = sphi 0, %s67
      %s84 = sphi 0, %s68
      %s88 = sphi 0, %s88
      %s90 = sphi 0, %s88
      %s91 = sphi 0, %s90
      %s105 = sphi 0, %s91
      %s113 = sphi 0, %s115
      %s116 = sphi 0, %s113
      %s117 = sphi 0, %s116
      %s133 = sphi 0, %s117
    $region4: #{idcst2.1} parent=1 // loop_header_branch
      %19 = sbr.rel (%p17) target = $region8
    $region5: #{idcst2.1} parent=1 // loop_body
      %s21 = ssub.s32 %s16, 1
      %s22 = ssub.s32 %s16, 2
      %s29 = sadd.s32 1, %s24
      %p30 = scmp.ge.s32.totalorder %s29, 1
      %s31 = scalar_select %p30, 0, %s29
      %s32 = sadd.s32 1, %s23
      %s33 = scalar_select %p30, %s32, %s23
      %p34 = scmp.ge.s32.totalorder %s33, 8
      %s35 = scalar_select %p34, 0, %s33
      %s36 = ssub.s32 %s23, %s35
      %p37 = scmp.eq.s32.totalorder %s36, 0
      %s39 = sadd.s32 %s38, 1
      %s40 = scalar_select %p37, %s38, %s39
      %p43 = pneg %p37
      %p44 = scmp.eq.s32.totalorder %s16, 7
      %p45 = por %p43, %p44
      %p46 = scmp.ne.s32.totalorder %s38, %s41
      %p47 = scmp.eq.s32.totalorder %s16, 0
      %p48 = por %p46, %p47
      %p49 = scmp.ne.s32.totalorder %s38, %s41
      %p50 = scmp.eq.s32.totalorder %s21, 7
      %p51 = por %p49, %p50
      %p52 = scmp.ne.s32.totalorder %s41, %s42
      %p53 = scmp.eq.s32.totalorder %s21, 0
      %p54 = por %p52, %p53
      %p55 = scmp.ne.s32.totalorder %s41, %s42
      %p56 = scmp.eq.s32.totalorder %s22, 7
      %p57 = por %p55, %p56
      %p59 = scmp.ne.s32.totalorder %s42, %s58
      %p60 = scmp.eq.s32.totalorder %s22, 0
      %p61 = por %p59, %p60
      %s62 = ssub.s32 %s24, %s31
      %p63 = scmp.eq.s32.totalorder %s62, 0
      %s65 = sadd.s32 %s64, 1
      %s66 = scalar_select %p63, %s64, %s65
      %p69 = pneg %p63
      %p70 = scmp.eq.s32.totalorder %s16, 7
      %p71 = por %p69, %p70
      %p72 = scmp.ne.s32.totalorder %s64, %s67
      %p73 = scmp.eq.s32.totalorder %s16, 0
      %p74 = por %p72, %p73
      %p75 = scmp.ne.s32.totalorder %s64, %s67
      %p76 = scmp.eq.s32.totalorder %s21, 7
      %p77 = por %p75, %p76
      %p78 = scmp.ne.s32.totalorder %s67, %s68
      %p79 = scmp.eq.s32.totalorder %s21, 0
      %p80 = por %p78, %p79
      %p81 = scmp.ne.s32.totalorder %s67, %s68
      %p82 = scmp.eq.s32.totalorder %s22, 7
      %p83 = por %p81, %p82
      %p85 = scmp.ne.s32.totalorder %s68, %s84
      %p86 = scmp.eq.s32.totalorder %s22, 0
      %p87 = por %p85, %p86
      %s89 = sadd.s32 %s88, 1
      %p92 = scmp.eq.s32.totalorder %s16, 7
      %p93 = scmp.ne.s32.totalorder %s88, %s90
      %p94 = scmp.eq.s32.totalorder %s16, 0
      %p95 = por %p93, %p94
      %p96 = scmp.ne.s32.totalorder %s88, %s90
      %p97 = scmp.eq.s32.totalorder %s21, 7
      %p98 = por %p96, %p97
      %p99 = scmp.ne.s32.totalorder %s90, %s91
      %p100 = scmp.eq.s32.totalorder %s21, 0
      %p101 = por %p99, %p100
      %p102 = scmp.ne.s32.totalorder %s90, %s91
      %p103 = scmp.eq.s32.totalorder %s22, 7
      %p104 = por %p102, %p103
      %p106 = scmp.ne.s32.totalorder %s91, %s105
      %p107 = scmp.eq.s32.totalorder %s22, 0
      %p108 = por %p106, %p107
      %s109 = ssub.s32 %s23, %s35
      %s110 = ssub.s32 %s24, %s31
      %s111 = sor.u32 %s109, %s110
      %p112 = scmp.eq.s32.totalorder %s111, 0
      %s114 = sadd.s32 %s113, 1
      %s115 = scalar_select %p112, %s113, %s114
      %p118 = pneg %p112
      %p119 = scmp.eq.s32.totalorder %s16, 7
      %p120 = por %p118, %p119
      %p121 = scmp.ne.s32.totalorder %s113, %s116
      %p122 = scmp.eq.s32.totalorder %s16, 0
      %p123 = por %p121, %p122
      %p124 = scmp.ne.s32.totalorder %s113, %s116
      %p125 = scmp.eq.s32.totalorder %s21, 7
      %p126 = por %p124, %p125
      %p127 = scmp.ne.s32.totalorder %s116, %s117
      %p128 = scmp.eq.s32.totalorder %s21, 0
      %p129 = por %p127, %p128
      %p130 = scmp.ne.s32.totalorder %s116, %s117
      %p131 = scmp.eq.s32.totalorder %s22, 7
      %p132 = por %p130, %p131
      %p134 = scmp.ne.s32.totalorder %s117, %s133
      %p135 = scmp.eq.s32.totalorder %s22, 0
      %p136 = por %p134, %p135
      %p137 = scmp.le.s32.totalorder 1, %s16
      %p138 = scmp.lt.s32.totalorder %s16, 9
      %p139 = pnand %p137, %p138
      %p140 = pneg %p139
      // Predicated region
      $region9: #{idcst2.1} parent=5 // pred_check
        _
      $region10: #{idcst2.1} parent=5 // pred_check_branch
        %142 = sbr.rel (%p139) target = $region12
      $region11: #{idcst2.1} parent=5 // pred_region
        %s143 = ssub.s32 %s16, 1
        // Predicated region
        $region13: #{idcst2.1} parent=11 // pred_check
          %p144 = pneg %p80
        $region14: #{idcst2.1} parent=11 // pred_check_branch
          %146 = sbr.rel (%p144) target = $region16
        $region15: #{idcst2.1} parent=11 // pred_region
          %s148 = ssub.s32 256, 256
          %149 = vsyncadd [#allocation6], %s148
          %s150 = smul.addr %s26, 128
          %s151 = scalar_lea.hbm %s1, %s150
          %s152 = sshll.u32 [#allocation5], 4
          %s153 = int_to_ptr.vmem [resolvable:$true] %s152
          %158 = dma.hbm_to_vmem [thread:$0]  %s151, 256, %s153, [#allocation6], 128, 128, 8
        $region16: #{idcst2.1} parent=11 // pred_fallthru
          _
        // Predicated region
        $region17: #{idcst2.1} parent=11 // pred_check
          %p159 = pneg %p101
        $region18: #{idcst2.1} parent=11 // pred_check_branch
          %161 = sbr.rel (%p159) target = $region20
        $region19: #{idcst2.1} parent=11 // pred_region
          %s163 = ssub.s32 256, 256
          %164 = vsyncadd [#allocation6], %s163
          %s165 = sshll.u32 [#allocation7], 4
          %s166 = int_to_ptr.vmem [resolvable:$true] %s165
          %171 = dma.hbm_to_vmem [thread:$0]  %s2, 256, %s166, [#allocation6], 128, 128, 8
        $region20: #{idcst2.1} parent=11 // pred_fallthru
          _
      $region12: #{idcst2.1} parent=5 // pred_fallthru
        _
      %p172 = scmp.lt.s32.totalorder %s16, 8
      // Predicated region
      $region21: #{idcst2.1} parent=5 // pred_check
        %p173 = pneg %p172
      $region22: #{idcst2.1} parent=5 // pred_check_branch
        %175 = sbr.rel (%p173) target = $region24
      $region23: #{idcst2.1} parent=5 // pred_region
        // Predicated region
        $region25: #{idcst2.1} parent=23 // pred_check
          %p176 = pneg %p48
        $region26: #{idcst2.1} parent=23 // pred_check_branch
          %178 = sbr.rel (%p176) target = $region28
        $region27: #{idcst2.1} parent=23 // pred_region
          %s179 = sand.u32 %s38, 1
          %s180 = scalar_lea.sflag [#allocation3], %s179
          %s181 = sand.u32 %s38, 1
          %s182 = smul.addr %s181, 16
          %s183 = scalar_lea.vmem [#allocation2], %s182
          %s185 = ssub.s32 256, 256
          %186 = vsyncadd %s180, %s185
          %s187 = smul.addr %s23, 2
          %s188 = smul.addr %s187, 128
          %s189 = scalar_lea.hbm %s0, %s188
          %s190 = sshll.u32 %s183, 4
          %s191 = int_to_ptr.vmem [resolvable:$true] %s190
          %196 = dma.hbm_to_vmem [thread:$0]  %s189, 256, %s191, %s180, 128, 128, 8
        $region28: #{idcst2.1} parent=23 // pred_fallthru
          _
      $region24: #{idcst2.1} parent=5 // pred_fallthru
        _
      %p197 = scmp.le.s32.totalorder 1, %s16
      %p198 = scmp.lt.s32.totalorder %s16, 9
      %p199 = pnand %p197, %p198
      %p200 = pneg %p199
      // Predicated region
      $region29: #{idcst2.1} parent=5 // pred_check
        _
      $region30: #{idcst2.1} parent=5 // pred_check_branch
        %202 = sbr.rel (%p199) target = $region32
      $region31: #{idcst2.1} parent=5 // pred_region
        %s203 = ssub.s32 %s16, 1
        %s204 = sand.u32 %s41, 1
        %s205 = scalar_lea.sflag [#allocation3], %s204
        %s206 = sand.u32 %s41, 1
        %s207 = smul.addr %s206, 16
        %s208 = scalar_lea.vmem [#allocation2], %s207
        // Predicated region
        $region33: #{idcst2.1} parent=31 // pred_check
          %p209 = pneg %p54
        $region34: #{idcst2.1} parent=31 // pred_check_branch
          %211 = sbr.rel (%p209) target = $region36
        $region35: #{idcst2.1} parent=31 // pred_region
          %212 = dma.done %s205, 256
        $region36: #{idcst2.1} parent=31 // pred_fallthru
          _
        // Predicated region
        $region37: #{idcst2.1} parent=31 // pred_check
          %p213 = pneg %p80
        $region38: #{idcst2.1} parent=31 // pred_check_branch
          %215 = sbr.rel (%p213) target = $region40
        $region39: #{idcst2.1} parent=31 // pred_region
          %216 = dma.done [#allocation6], 256
        $region40: #{idcst2.1} parent=31 // pred_fallthru
          _
        // Predicated region
        $region41: #{idcst2.1} parent=31 // pred_check
          %p217 = pneg %p101
        $region42: #{idcst2.1} parent=31 // pred_check_branch
          %219 = sbr.rel (%p217) target = $region44
        $region43: #{idcst2.1} parent=31 // pred_region
          %220 = dma.done [#allocation6], 256
        $region44: #{idcst2.1} parent=31 // pred_fallthru
          _
        %s221 = sand.u32 %s41, 1
        %s222 = scalar_lea.sflag [#allocation3], %s221
        %s223 = sand.u32 %s41, 1
        %s224 = smul.addr %s223, 16
        %s225 = scalar_lea.vmem [#allocation2], %s224
        %p226 = pneg %p54
        %p227 = pneg %p51
        %p228 = pneg %p80
        %p229 = pneg %p77
        %p230 = pneg %p101
        %p231 = pneg %p98
        %p232 = pneg %p129
        %p233 = pneg %p126
        %s234 = sand.u32 %s116, 1
        %s235 = scalar_lea.sflag [#allocation4], %s234
        %s236 = sand.u32 %s116, 1
        %s237 = smul.addr %s236, 16
        %s238 = scalar_lea.vmem [#allocation8], %s237
        %v239 = vld [vmem:[%s208] sm:$0xff]
        %v240 = vld [vmem:[%s208 + $0x8] sm:$0xff]
        %v241 = vld [vmem:[#allocation5] sm:$0xff]
        %v242 = vld [vmem:[#allocation5 + $0x8] sm:$0xff]
        %vm243 = vcmask 130048
        %v245 = vsel %vm243, %v239, 0
        %v248 = vsel %vm243, %v240, 0
        %250 = vmatprep.subr.mxu0 0.0
        %v251 = vand.u32 %v241, 4294901760
        %252 = vmatpush1.msra.mxu0 %v251
        %253 = vmatprep.subr.mxu0 0.0
        %v254 = vand.u32 %v242, 4294901760
        %255 = vmatpush1.msra.mxu0 %v254
        %256 = vmatprep.subr.mxu0 0.0
        %257 = vmatpush1.msra.mxu0 0.0
        %258 = vmatprep.subr.mxu0 0.0
        %259 = vmatpush1.msra.mxu0 0.0
        %260 = vmatprep.subr.mxu0 0.0
        %261 = vmatpush1.msra.mxu0 0.0
        %262 = vmatprep.subr.mxu0 0.0
        %263 = vmatpush1.msra.mxu0 0.0
        %264 = vmatprep.subr.mxu0 0.0
        %265 = vmatpush1.msra.mxu0 0.0
        %266 = vmatprep.subr.mxu0 0.0
        %267 = vmatpush1.msra.mxu0 0.0
        %268 = vmatprep.subr.mxu0 0.0
        %269 = vmatpush1.msra.mxu0 0.0
        %270 = vmatprep.subr.mxu0 0.0
        %271 = vmatpush1.msra.mxu0 0.0
        %272 = vmatprep.subr.mxu0 0.0
        %273 = vmatpush1.msra.mxu0 0.0
        %274 = vmatprep.subr.mxu0 0.0
        %275 = vmatpush1.msra.mxu0 0.0
        %276 = vmatprep.subr.mxu0 0.0
        %277 = vmatpush1.msra.mxu0 0.0
        %278 = vmatprep.subr.mxu0 0.0
        %279 = vmatpush1.msra.mxu0 0.0
        %280 = vmatprep.subr.mxu0 0.0
        %281 = vmatpush1.msra.mxu0 0.0
        %282 = vmatprep.subr.mxu0 0.0
        %283 = vmatpush1.msra.mxu0 0.0
        %284 = vmatprep.subr.mxu0 0.0
        %285 = vmatpush1.msra.mxu0 0.0
        %286 = vmatprep.subr.mxu0 0.0
        %287 = vmatpush1.msra.mxu0 0.0
        %288 = vmatprep.subr.mxu0 0.0
        %289 = vmatpush1.msra.mxu0 0.0
        %290 = vmatprep.subr.mxu0 0.0
        %291 = vmatpush1.msra.mxu0 0.0
        %292 = vmatprep.subr.mxu0 0.0
        %293 = vmatpush1.msra.mxu0 0.0
        %294 = vmatprep.subr.mxu0 0.0
        %295 = vmatpush1.msra.mxu0 0.0
        %296 = vmatprep.subr.mxu0 0.0
        %297 = vmatpush1.msra.mxu0 0.0
        %298 = vmatprep.subr.mxu0 0.0
        %299 = vmatpush1.msra.mxu0 0.0
        %300 = vmatprep.subr.mxu0 0.0
        %301 = vmatpush1.msra.mxu0 0.0
        %302 = vmatprep.subr.mxu0 0.0
        %303 = vmatpush1.msra.mxu0 0.0
        %304 = vmatprep.subr.mxu0 0.0
        %305 = vmatpush1.msra.mxu0 0.0
        %306 = vmatprep.subr.mxu0 0.0
        %307 = vmatpush1.msra.mxu0 0.0
        %308 = vmatprep.subr.mxu0 0.0
        %309 = vmatpush1.msra.mxu0 0.0
        %310 = vmatprep.subr.mxu0 0.0
        %311 = vmatpush1.msra.mxu0 0.0
        %312 = vmatprep.subr.mxu0 0.0
        %313 = vmatpush1.msra.mxu0 0.0
        %314 = vmatprep.subr.mxu0 0.0
        %315 = vmatpush1.msra.mxu0 0.0
        %316 = vmatprep.mubr.f32.mxu0 0.0
        %v317 = vand.u32 %v245, 4294901760
        %v318 = vsub.f32 %v245, %v317
        %v319 = vand.u32 %v318, 4294901760
        %v320 = vsub.f32 %v318, %v319
        %v321 = vand.u32 %v320, 4294901760
        %322 = vmatmul.mubr.f32.gmra.mrb[0].mxu0 %v321
        %v323 = vpop.f32.mrb[0].mxu0
        %v324 = vadd.f32 0.0, %v323
        %v325 = vpop.f32.mrb[0].mxu0
        %326 = vmatprep.mubr.f32.mxu0 0.0
        %v327 = vand.u32 %v248, 4294901760
        %v328 = vsub.f32 %v248, %v327
        %v329 = vand.u32 %v328, 4294901760
        %v330 = vsub.f32 %v328, %v329
        %v331 = vand.u32 %v330, 4294901760
        %332 = vmatmul.mubr.f32.gmra.mrb[0].mxu0 %v331
        %v333 = vpop.f32.mrb[0].mxu0
        %v334 = vadd.f32 0.0, %v333
        %v335 = vpop.f32.mrb[0].mxu0
        %336 = vdwg.mxu0
        %337 = vmatprep.subr.mxu0 0.0
        %v338 = vand.u32 %v241, 4294901760
        %v339 = vsub.f32 %v241, %v338
        %v340 = vand.u32 %v339, 4294901760
        %v341 = vsub.f32 %v339, %v340
        %v342 = vand.u32 %v341, 4294901760
        %343 = vmatpush1.msra.mxu0 %v342
        %344 = vmatprep.subr.mxu0 0.0
        %v345 = vand.u32 %v242, 4294901760
        %v346 = vsub.f32 %v242, %v345
        %v347 = vand.u32 %v346, 4294901760
        %v348 = vsub.f32 %v346, %v347
        %v349 = vand.u32 %v348, 4294901760
        %350 = vmatpush1.msra.mxu0 %v349
        %351 = vmatprep.subr.mxu0 0.0
        %352 = vmatpush1.msra.mxu0 0.0
        %353 = vmatprep.subr.mxu0 0.0
        %354 = vmatpush1.msra.mxu0 0.0
        %355 = vmatprep.subr.mxu0 0.0
        %356 = vmatpush1.msra.mxu0 0.0
        %357 = vmatprep.subr.mxu0 0.0
        %358 = vmatpush1.msra.mxu0 0.0
        %359 = vmatprep.subr.mxu0 0.0
        %360 = vmatpush1.msra.mxu0 0.0
        %361 = vmatprep.subr.mxu0 0.0
        %362 = vmatpush1.msra.mxu0 0.0
        %363 = vmatprep.subr.mxu0 0.0
        %364 = vmatpush1.msra.mxu0 0.0
        %365 = vmatprep.subr.mxu0 0.0
        %366 = vmatpush1.msra.mxu0 0.0
        %367 = vmatprep.subr.mxu0 0.0
        %368 = vmatpush1.msra.mxu0 0.0
        %369 = vmatprep.subr.mxu0 0.0
        %370 = vmatpush1.msra.mxu0 0.0
        %371 = vmatprep.subr.mxu0 0.0
        %372 = vmatpush1.msra.mxu0 0.0
        %373 = vmatprep.subr.mxu0 0.0
        %374 = vmatpush1.msra.mxu0 0.0
        %375 = vmatprep.subr.mxu0 0.0
        %376 = vmatpush1.msra.mxu0 0.0
        %377 = vmatprep.subr.mxu0 0.0
        %378 = vmatpush1.msra.mxu0 0.0
        %379 = vmatprep.subr.mxu0 0.0
        %380 = vmatpush1.msra.mxu0 0.0
        %381 = vmatprep.subr.mxu0 0.0
        %382 = vmatpush1.msra.mxu0 0.0
        %383 = vmatprep.subr.mxu0 0.0
        %384 = vmatpush1.msra.mxu0 0.0
        %385 = vmatprep.subr.mxu0 0.0
        %386 = vmatpush1.msra.mxu0 0.0
        %387 = vmatprep.subr.mxu0 0.0
        %388 = vmatpush1.msra.mxu0 0.0
        %389 = vmatprep.subr.mxu0 0.0
        %390 = vmatpush1.msra.mxu0 0.0
        %391 = vmatprep.subr.mxu0 0.0
        %392 = vmatpush1.msra.mxu0 0.0
        %393 = vmatprep.subr.mxu0 0.0
        %394 = vmatpush1.msra.mxu0 0.0
        %395 = vmatprep.subr.mxu0 0.0
        %396 = vmatpush1.msra.mxu0 0.0
        %397 = vmatprep.subr.mxu0 0.0
        %398 = vmatpush1.msra.mxu0 0.0
        %399 = vmatprep.subr.mxu0 0.0
        %400 = vmatpush1.msra.mxu0 0.0
        %401 = vmatprep.subr.mxu0 0.0
        %402 = vmatpush1.msra.mxu0 0.0
        %403 = vmatprep.subr.mxu0 0.0
        %404 = vmatpush1.msra.mxu0 0.0
        %405 = vmatprep.subr.mxu0 0.0
        %406 = vmatpush1.msra.mxu0 0.0
        %407 = vmatprep.subr.mxu0 0.0
        %408 = vmatpush1.msra.mxu0 0.0
        %409 = vmatprep.subr.mxu0 0.0
        %410 = vmatpush1.msra.mxu0 0.0
        %411 = vmatprep.mubr.f32.mxu0 0.0
        %v412 = vand.u32 %v245, 4294901760
        %413 = vmatmul.mubr.f32.gmra.mrb[0].mxu0 %v412
        %v414 = vpop.f32.mrb[0].mxu0
        %v415 = vadd.f32 %v324, %v414
        %v416 = vpop.f32.mrb[0].mxu0
        %417 = vmatprep.mubr.f32.mxu0 0.0
        %v418 = vand.u32 %v248, 4294901760
        %419 = vmatmul.mubr.f32.gmra.mrb[0].mxu0 %v418
        %v420 = vpop.f32.mrb[0].mxu0
        %v421 = vadd.f32 %v334, %v420
        %v422 = vpop.f32.mrb[0].mxu0
        %423 = vdwg.mxu0
        %424 = vmatprep.subr.mxu0 0.0
        %v425 = vand.u32 %v241, 4294901760
        %v426 = vsub.f32 %v241, %v425
        %427 = vmatpush1.msra.mxu0 %v426
        %428 = vmatprep.subr.mxu0 0.0
        %v429 = vand.u32 %v242, 4294901760
        %v430 = vsub.f32 %v242, %v429
        %431 = vmatpush1.msra.mxu0 %v430
        %432 = vmatprep.subr.mxu0 0.0
        %433 = vmatpush1.msra.mxu0 0.0
        %434 = vmatprep.subr.mxu0 0.0
        %435 = vmatpush1.msra.mxu0 0.0
        %436 = vmatprep.subr.mxu0 0.0
        %437 = vmatpush1.msra.mxu0 0.0
        %438 = vmatprep.subr.mxu0 0.0
        %439 = vmatpush1.msra.mxu0 0.0
        %440 = vmatprep.subr.mxu0 0.0
        %441 = vmatpush1.msra.mxu0 0.0
        %442 = vmatprep.subr.mxu0 0.0
        %443 = vmatpush1.msra.mxu0 0.0
        %444 = vmatprep.subr.mxu0 0.0
        %445 = vmatpush1.msra.mxu0 0.0
        %446 = vmatprep.subr.mxu0 0.0
        %447 = vmatpush1.msra.mxu0 0.0
        %448 = vmatprep.subr.mxu0 0.0
        %449 = vmatpush1.msra.mxu0 0.0
        %450 = vmatprep.subr.mxu0 0.0
        %451 = vmatpush1.msra.mxu0 0.0
        %452 = vmatprep.subr.mxu0 0.0
        %453 = vmatpush1.msra.mxu0 0.0
        %454 = vmatprep.subr.mxu0 0.0
        %455 = vmatpush1.msra.mxu0 0.0
        %456 = vmatprep.subr.mxu0 0.0
        %457 = vmatpush1.msra.mxu0 0.0
        %458 = vmatprep.subr.mxu0 0.0
        %459 = vmatpush1.msra.mxu0 0.0
        %460 = vmatprep.subr.mxu0 0.0
        %461 = vmatpush1.msra.mxu0 0.0
        %462 = vmatprep.subr.mxu0 0.0
        %463 = vmatpush1.msra.mxu0 0.0
        %464 = vmatprep.subr.mxu0 0.0
        %465 = vmatpush1.msra.mxu0 0.0
        %466 = vmatprep.subr.mxu0 0.0
        %467 = vmatpush1.msra.mxu0 0.0
        %468 = vmatprep.subr.mxu0 0.0
        %469 = vmatpush1.msra.mxu0 0.0
        %470 = vmatprep.subr.mxu0 0.0
        %471 = vmatpush1.msra.mxu0 0.0
        %472 = vmatprep.subr.mxu0 0.0
        %473 = vmatpush1.msra.mxu0 0.0
        %474 = vmatprep.subr.mxu0 0.0
        %475 = vmatpush1.msra.mxu0 0.0
        %476 = vmatprep.subr.mxu0 0.0
        %477 = vmatpush1.msra.mxu0 0.0
        %478 = vmatprep.subr.mxu0 0.0
        %479 = vmatpush1.msra.mxu0 0.0
        %480 = vmatprep.subr.mxu0 0.0
        %481 = vmatpush1.msra.mxu0 0.0
        %482 = vmatprep.subr.mxu0 0.0
        %483 = vmatpush1.msra.mxu0 0.0
        %484 = vmatprep.subr.mxu0 0.0
        %485 = vmatpush1.msra.mxu0 0.0
        %486 = vmatprep.subr.mxu0 0.0
        %487 = vmatpush1.msra.mxu0 0.0
        %488 = vmatprep.subr.mxu0 0.0
        %489 = vmatpush1.msra.mxu0 0.0
        %490 = vmatprep.subr.mxu0 0.0
        %491 = vmatpush1.msra.mxu0 0.0
        %492 = vmatprep.mubr.f32.mxu0 0.0
        %v493 = vand.u32 %v245, 4294901760
        %v494 = vsub.f32 %v245, %v493
        %495 = vmatmul.mubr.f32.gmra.mrb[0].mxu0 %v494
        %v496 = vpop.f32.mrb[0].mxu0
        %v497 = vadd.f32 %v415, %v496
        %v498 = vpop.f32.mrb[0].mxu0
        %499 = vmatprep.mubr.f32.mxu0 0.0
        %v500 = vand.u32 %v248, 4294901760
        %v501 = vsub.f32 %v248, %v500
        %502 = vmatmul.mubr.f32.gmra.mrb[0].mxu0 %v501
        %v503 = vpop.f32.mrb[0].mxu0
        %v504 = vadd.f32 %v421, %v503
        %v505 = vpop.f32.mrb[0].mxu0
        %506 = vdwg.mxu0
        %507 = vmatprep.subr.mxu0 0.0
        %v508 = vand.u32 %v241, 4294901760
        %509 = vmatpush1.msra.mxu0 %v508
        %510 = vmatprep.subr.mxu0 0.0
        %v511 = vand.u32 %v242, 4294901760
        %512 = vmatpush1.msra.mxu0 %v511
        %513 = vmatprep.subr.mxu0 0.0
        %514 = vmatpush1.msra.mxu0 0.0
        %515 = vmatprep.subr.mxu0 0.0
        %516 = vmatpush1.msra.mxu0 0.0
        %517 = vmatprep.subr.mxu0 0.0
        %518 = vmatpush1.msra.mxu0 0.0
        %519 = vmatprep.subr.mxu0 0.0
        %520 = vmatpush1.msra.mxu0 0.0
        %521 = vmatprep.subr.mxu0 0.0
        %522 = vmatpush1.msra.mxu0 0.0
        %523 = vmatprep.subr.mxu0 0.0
        %524 = vmatpush1.msra.mxu0 0.0
        %525 = vmatprep.subr.mxu0 0.0
        %526 = vmatpush1.msra.mxu0 0.0
        %527 = vmatprep.subr.mxu0 0.0
        %528 = vmatpush1.msra.mxu0 0.0
        %529 = vmatprep.subr.mxu0 0.0
        %530 = vmatpush1.msra.mxu0 0.0
        %531 = vmatprep.subr.mxu0 0.0
        %532 = vmatpush1.msra.mxu0 0.0
        %533 = vmatprep.subr.mxu0 0.0
        %534 = vmatpush1.msra.mxu0 0.0
        %535 = vmatprep.subr.mxu0 0.0
        %536 = vmatpush1.msra.mxu0 0.0
        %537 = vmatprep.subr.mxu0 0.0
        %538 = vmatpush1.msra.mxu0 0.0
        %539 = vmatprep.subr.mxu0 0.0
        %540 = vmatpush1.msra.mxu0 0.0
        %541 = vmatprep.subr.mxu0 0.0
        %542 = vmatpush1.msra.mxu0 0.0
        %543 = vmatprep.subr.mxu0 0.0
        %544 = vmatpush1.msra.mxu0 0.0
        %545 = vmatprep.subr.mxu0 0.0
        %546 = vmatpush1.msra.mxu0 0.0
        %547 = vmatprep.subr.mxu0 0.0
        %548 = vmatpush1.msra.mxu0 0.0
        %549 = vmatprep.subr.mxu0 0.0
        %550 = vmatpush1.msra.mxu0 0.0
        %551 = vmatprep.subr.mxu0 0.0
        %552 = vmatpush1.msra.mxu0 0.0
        %553 = vmatprep.subr.mxu0 0.0
        %554 = vmatpush1.msra.mxu0 0.0
        %555 = vmatprep.subr.mxu0 0.0
        %556 = vmatpush1.msra.mxu0 0.0
        %557 = vmatprep.subr.mxu0 0.0
        %558 = vmatpush1.msra.mxu0 0.0
        %559 = vmatprep.subr.mxu0 0.0
        %560 = vmatpush1.msra.mxu0 0.0
        %561 = vmatprep.subr.mxu0 0.0
        %562 = vmatpush1.msra.mxu0 0.0
        %563 = vmatprep.subr.mxu0 0.0
        %564 = vmatpush1.msra.mxu0 0.0
        %565 = vmatprep.subr.mxu0 0.0
        %566 = vmatpush1.msra.mxu0 0.0
        %567 = vmatprep.subr.mxu0 0.0
        %568 = vmatpush1.msra.mxu0 0.0
        %569 = vmatprep.subr.mxu0 0.0
        %570 = vmatpush1.msra.mxu0 0.0
        %571 = vmatprep.subr.mxu0 0.0
        %572 = vmatpush1.msra.mxu0 0.0
        %573 = vmatprep.mubr.f32.mxu0 0.0
        %v574 = vand.u32 %v245, 4294901760
        %v575 = vsub.f32 %v245, %v574
        %v576 = vand.u32 %v575, 4294901760
        %577 = vmatmul.mubr.f32.gmra.mrb[0].mxu0 %v576
        %v578 = vpop.f32.mrb[0].mxu0
        %v579 = vadd.f32 %v497, %v578
        %v580 = vpop.f32.mrb[0].mxu0
        %581 = vmatprep.mubr.f32.mxu0 0.0
        %v582 = vand.u32 %v248, 4294901760
        %v583 = vsub.f32 %v248, %v582
        %v584 = vand.u32 %v583, 4294901760
        %585 = vmatmul.mubr.f32.gmra.mrb[0].mxu0 %v584
        %v586 = vpop.f32.mrb[0].mxu0
        %v587 = vadd.f32 %v504, %v586
        %v588 = vpop.f32.mrb[0].mxu0
        %589 = vdwg.mxu0
        %590 = vmatprep.subr.mxu0 0.0
        %v591 = vand.u32 %v241, 4294901760
        %v592 = vsub.f32 %v241, %v591
        %v593 = vand.u32 %v592, 4294901760
        %594 = vmatpush1.msra.mxu0 %v593
        %595 = vmatprep.subr.mxu0 0.0
        %v596 = vand.u32 %v242, 4294901760
        %v597 = vsub.f32 %v242, %v596
        %v598 = vand.u32 %v597, 4294901760
        %599 = vmatpush1.msra.mxu0 %v598
        %600 = vmatprep.subr.mxu0 0.0
        %601 = vmatpush1.msra.mxu0 0.0
        %602 = vmatprep.subr.mxu0 0.0
        %603 = vmatpush1.msra.mxu0 0.0
        %604 = vmatprep.subr.mxu0 0.0
        %605 = vmatpush1.msra.mxu0 0.0
        %606 = vmatprep.subr.mxu0 0.0
        %607 = vmatpush1.msra.mxu0 0.0
        %608 = vmatprep.subr.mxu0 0.0
        %609 = vmatpush1.msra.mxu0 0.0
        %610 = vmatprep.subr.mxu0 0.0
        %611 = vmatpush1.msra.mxu0 0.0
        %612 = vmatprep.subr.mxu0 0.0
        %613 = vmatpush1.msra.mxu0 0.0
        %614 = vmatprep.subr.mxu0 0.0
        %615 = vmatpush1.msra.mxu0 0.0
        %616 = vmatprep.subr.mxu0 0.0
        %617 = vmatpush1.msra.mxu0 0.0
        %618 = vmatprep.subr.mxu0 0.0
        %619 = vmatpush1.msra.mxu0 0.0
        %620 = vmatprep.subr.mxu0 0.0
        %621 = vmatpush1.msra.mxu0 0.0
        %622 = vmatprep.subr.mxu0 0.0
        %623 = vmatpush1.msra.mxu0 0.0
        %624 = vmatprep.subr.mxu0 0.0
        %625 = vmatpush1.msra.mxu0 0.0
        %626 = vmatprep.subr.mxu0 0.0
        %627 = vmatpush1.msra.mxu0 0.0
        %628 = vmatprep.subr.mxu0 0.0
        %629 = vmatpush1.msra.mxu0 0.0
        %630 = vmatprep.subr.mxu0 0.0
        %631 = vmatpush1.msra.mxu0 0.0
        %632 = vmatprep.subr.mxu0 0.0
        %633 = vmatpush1.msra.mxu0 0.0
        %634 = vmatprep.subr.mxu0 0.0
        %635 = vmatpush1.msra.mxu0 0.0
        %636 = vmatprep.subr.mxu0 0.0
        %637 = vmatpush1.msra.mxu0 0.0
        %638 = vmatprep.subr.mxu0 0.0
        %639 = vmatpush1.msra.mxu0 0.0
        %640 = vmatprep.subr.mxu0 0.0
        %641 = vmatpush1.msra.mxu0 0.0
        %642 = vmatprep.subr.mxu0 0.0
        %643 = vmatpush1.msra.mxu0 0.0
        %644 = vmatprep.subr.mxu0 0.0
        %645 = vmatpush1.msra.mxu0 0.0
        %646 = vmatprep.subr.mxu0 0.0
        %647 = vmatpush1.msra.mxu0 0.0
        %648 = vmatprep.subr.mxu0 0.0
        %649 = vmatpush1.msra.mxu0 0.0
        %650 = vmatprep.subr.mxu0 0.0
        %651 = vmatpush1.msra.mxu0 0.0
        %652 = vmatprep.subr.mxu0 0.0
        %653 = vmatpush1.msra.mxu0 0.0
        %654 = vmatprep.subr.mxu0 0.0
        %655 = vmatpush1.msra.mxu0 0.0
        %656 = vmatprep.subr.mxu0 0.0
        %657 = vmatpush1.msra.mxu0 0.0
        %658 = vmatprep.subr.mxu0 0.0
        %659 = vmatpush1.msra.mxu0 0.0
        %660 = vmatprep.mubr.f32.mxu0 0.0
        %v661 = vand.u32 %v245, 4294901760
        %662 = vmatmul.mubr.f32.gmra.mrb[0].mxu0 %v661
        %v663 = vpop.f32.mrb[0].mxu0
        %v664 = vadd.f32 %v579, %v663
        %v665 = vpop.f32.mrb[0].mxu0
        %666 = vmatprep.mubr.f32.mxu0 0.0
        %v667 = vand.u32 %v248, 4294901760
        %668 = vmatmul.mubr.f32.gmra.mrb[0].mxu0 %v667
        %v669 = vpop.f32.mrb[0].mxu0
        %v670 = vadd.f32 %v587, %v669
        %v671 = vpop.f32.mrb[0].mxu0
        %672 = vdwg.mxu0
        %673 = vmatprep.subr.mxu0 0.0
        %v674 = vand.u32 %v241, 4294901760
        %675 = vmatpush1.msra.mxu0 %v674
        %676 = vmatprep.subr.mxu0 0.0
        %v677 = vand.u32 %v242, 4294901760
        %678 = vmatpush1.msra.mxu0 %v677
        %679 = vmatprep.subr.mxu0 0.0
        %680 = vmatpush1.msra.mxu0 0.0
        %681 = vmatprep.subr.mxu0 0.0
        %682 = vmatpush1.msra.mxu0 0.0
        %683 = vmatprep.subr.mxu0 0.0
        %684 = vmatpush1.msra.mxu0 0.0
        %685 = vmatprep.subr.mxu0 0.0
        %686 = vmatpush1.msra.mxu0 0.0
        %687 = vmatprep.subr.mxu0 0.0
        %688 = vmatpush1.msra.mxu0 0.0
        %689 = vmatprep.subr.mxu0 0.0
        %690 = vmatpush1.msra.mxu0 0.0
        %691 = vmatprep.subr.mxu0 0.0
        %692 = vmatpush1.msra.mxu0 0.0
        %693 = vmatprep.subr.mxu0 0.0
        %694 = vmatpush1.msra.mxu0 0.0
        %695 = vmatprep.subr.mxu0 0.0
        %696 = vmatpush1.msra.mxu0 0.0
        %697 = vmatprep.subr.mxu0 0.0
        %698 = vmatpush1.msra.mxu0 0.0
        %699 = vmatprep.subr.mxu0 0.0
        %700 = vmatpush1.msra.mxu0 0.0
        %701 = vmatprep.subr.mxu0 0.0
        %702 = vmatpush1.msra.mxu0 0.0
        %703 = vmatprep.subr.mxu0 0.0
        %704 = vmatpush1.msra.mxu0 0.0
        %705 = vmatprep.subr.mxu0 0.0
        %706 = vmatpush1.msra.mxu0 0.0
        %707 = vmatprep.subr.mxu0 0.0
        %708 = vmatpush1.msra.mxu0 0.0
        %709 = vmatprep.subr.mxu0 0.0
        %710 = vmatpush1.msra.mxu0 0.0
        %711 = vmatprep.subr.mxu0 0.0
        %712 = vmatpush1.msra.mxu0 0.0
        %713 = vmatprep.subr.mxu0 0.0
        %714 = vmatpush1.msra.mxu0 0.0
        %715 = vmatprep.subr.mxu0 0.0
        %716 = vmatpush1.msra.mxu0 0.0
        %717 = vmatprep.subr.mxu0 0.0
        %718 = vmatpush1.msra.mxu0 0.0
        %719 = vmatprep.subr.mxu0 0.0
        %720 = vmatpush1.msra.mxu0 0.0
        %721 = vmatprep.subr.mxu0 0.0
        %722 = vmatpush1.msra.mxu0 0.0
        %723 = vmatprep.subr.mxu0 0.0
        %724 = vmatpush1.msra.mxu0 0.0
        %725 = vmatprep.subr.mxu0 0.0
        %726 = vmatpush1.msra.mxu0 0.0
        %727 = vmatprep.subr.mxu0 0.0
        %728 = vmatpush1.msra.mxu0 0.0
        %729 = vmatprep.subr.mxu0 0.0
        %730 = vmatpush1.msra.mxu0 0.0
        %731 = vmatprep.subr.mxu0 0.0
        %732 = vmatpush1.msra.mxu0 0.0
        %733 = vmatprep.subr.mxu0 0.0
        %734 = vmatpush1.msra.mxu0 0.0
        %735 = vmatprep.subr.mxu0 0.0
        %736 = vmatpush1.msra.mxu0 0.0
        %737 = vmatprep.subr.mxu0 0.0
        %738 = vmatpush1.msra.mxu0 0.0
        %739 = vmatprep.mubr.f32.mxu0 0.0
        %v740 = vand.u32 %v245, 4294901760
        %741 = vmatmul.mubr.f32.gmra.mrb[0].mxu0 %v740
        %v742 = vpop.f32.mrb[0].mxu0
        %v743 = vadd.f32 %v664, %v742
        %v744 = vpop.f32.mrb[0].mxu0
        %745 = vmatprep.mubr.f32.mxu0 0.0
        %v746 = vand.u32 %v248, 4294901760
        %747 = vmatmul.mubr.f32.gmra.mrb[0].mxu0 %v746
        %v748 = vpop.f32.mrb[0].mxu0
        %v749 = vadd.f32 %v670, %v748
        %v750 = vpop.f32.mrb[0].mxu0
        %751 = vdwg.mxu0
        %v752 = vld [vmem:[#allocation7] sm:$0xff]
        %v753 = vld [vmem:[#allocation7 + $0x8] sm:$0xff]
        %v755 = vsel %vm243, %v752, 0
        %v758 = vsel %vm243, %v753, 0
        %760 = vmatprep.subr.mxu0 0.0
        %v761 = vand.u32 %v743, 4294901760
        %762 = vmatpush1.msra.mxu0 %v761
        %763 = vmatprep.subr.mxu0 0.0
        %v764 = vand.u32 %v749, 4294901760
        %765 = vmatpush1.msra.mxu0 %v764
        %766 = vmatprep.subr.mxu0 0.0
        %767 = vmatpush1.msra.mxu0 0.0
        %768 = vmatprep.subr.mxu0 0.0
        %769 = vmatpush1.msra.mxu0 0.0
        %770 = vmatprep.subr.mxu0 0.0
        %771 = vmatpush1.msra.mxu0 0.0
        %772 = vmatprep.subr.mxu0 0.0
        %773 = vmatpush1.msra.mxu0 0.0
        %774 = vmatprep.subr.mxu0 0.0
        %775 = vmatpush1.msra.mxu0 0.0
        %776 = vmatprep.subr.mxu0 0.0
        %777 = vmatpush1.msra.mxu0 0.0
        %778 = vmatprep.subr.mxu0 0.0
        %779 = vmatpush1.msra.mxu0 0.0
        %780 = vmatprep.subr.mxu0 0.0
        %781 = vmatpush1.msra.mxu0 0.0
        %782 = vmatprep.subr.mxu0 0.0
        %783 = vmatpush1.msra.mxu0 0.0
        %784 = vmatprep.subr.mxu0 0.0
        %785 = vmatpush1.msra.mxu0 0.0
        %786 = vmatprep.subr.mxu0 0.0
        %787 = vmatpush1.msra.mxu0 0.0
        %788 = vmatprep.subr.mxu0 0.0
        %789 = vmatpush1.msra.mxu0 0.0
        %790 = vmatprep.subr.mxu0 0.0
        %791 = vmatpush1.msra.mxu0 0.0
        %792 = vmatprep.subr.mxu0 0.0
        %793 = vmatpush1.msra.mxu0 0.0
        %794 = vmatprep.subr.mxu0 0.0
        %795 = vmatpush1.msra.mxu0 0.0
        %796 = vmatprep.subr.mxu0 0.0
        %797 = vmatpush1.msra.mxu0 0.0
        %798 = vmatprep.subr.mxu0 0.0
        %799 = vmatpush1.msra.mxu0 0.0
        %800 = vmatprep.subr.mxu0 0.0
        %801 = vmatpush1.msra.mxu0 0.0
        %802 = vmatprep.subr.mxu0 0.0
        %803 = vmatpush1.msra.mxu0 0.0
        %804 = vmatprep.subr.mxu0 0.0
        %805 = vmatpush1.msra.mxu0 0.0
        %806 = vmatprep.subr.mxu0 0.0
        %807 = vmatpush1.msra.mxu0 0.0
        %808 = vmatprep.subr.mxu0 0.0
        %809 = vmatpush1.msra.mxu0 0.0
        %810 = vmatprep.subr.mxu0 0.0
        %811 = vmatpush1.msra.mxu0 0.0
        %812 = vmatprep.subr.mxu0 0.0
        %813 = vmatpush1.msra.mxu0 0.0
        %814 = vmatprep.subr.mxu0 0.0
        %815 = vmatpush1.msra.mxu0 0.0
        %816 = vmatprep.subr.mxu0 0.0
        %817 = vmatpush1.msra.mxu0 0.0
        %818 = vmatprep.subr.mxu0 0.0
        %819 = vmatpush1.msra.mxu0 0.0
        %820 = vmatprep.subr.mxu0 0.0
        %821 = vmatpush1.msra.mxu0 0.0
        %822 = vmatprep.subr.mxu0 0.0
        %823 = vmatpush1.msra.mxu0 0.0
        %824 = vmatprep.subr.mxu0 0.0
        %825 = vmatpush1.msra.mxu0 0.0
        %826 = vmatprep.mubr.f32.mxu0 0.0
        %v827 = vand.u32 %v755, 4294901760
        %v828 = vsub.f32 %v755, %v827
        %v829 = vand.u32 %v828, 4294901760
        %v830 = vsub.f32 %v828, %v829
        %v831 = vand.u32 %v830, 4294901760
        %832 = vmatmul.mubr.f32.gmra.mrb[0].mxu0 %v831
        %v833 = vpop.f32.mrb[0].mxu0
        %v834 = vadd.f32 0.0, %v833
        %v835 = vpop.f32.mrb[0].mxu0
        %836 = vmatprep.mubr.f32.mxu0 0.0
        %v837 = vand.u32 %v758, 4294901760
        %v838 = vsub.f32 %v758, %v837
        %v839 = vand.u32 %v838, 4294901760
        %v840 = vsub.f32 %v838, %v839
        %v841 = vand.u32 %v840, 4294901760
        %842 = vmatmul.mubr.f32.gmra.mrb[0].mxu0 %v841
        %v843 = vpop.f32.mrb[0].mxu0
        %v844 = vadd.f32 0.0, %v843
        %v845 = vpop.f32.mrb[0].mxu0
        %846 = vdwg.mxu0
        %847 = vmatprep.subr.mxu0 0.0
        %v848 = vand.u32 %v743, 4294901760
        %v849 = vsub.f32 %v743, %v848
        %v850 = vand.u32 %v849, 4294901760
        %v851 = vsub.f32 %v849, %v850
        %v852 = vand.u32 %v851, 4294901760
        %853 = vmatpush1.msra.mxu0 %v852
        %854 = vmatprep.subr.mxu0 0.0
        %v855 = vand.u32 %v749, 4294901760
        %v856 = vsub.f32 %v749, %v855
        %v857 = vand.u32 %v856, 4294901760
        %v858 = vsub.f32 %v856, %v857
        %v859 = vand.u32 %v858, 4294901760
        %860 = vmatpush1.msra.mxu0 %v859
        %861 = vmatprep.subr.mxu0 0.0
        %862 = vmatpush1.msra.mxu0 0.0
        %863 = vmatprep.subr.mxu0 0.0
        %864 = vmatpush1.msra.mxu0 0.0
        %865 = vmatprep.subr.mxu0 0.0
        %866 = vmatpush1.msra.mxu0 0.0
        %867 = vmatprep.subr.mxu0 0.0
        %868 = vmatpush1.msra.mxu0 0.0
        %869 = vmatprep.subr.mxu0 0.0
        %870 = vmatpush1.msra.mxu0 0.0
        %871 = vmatprep.subr.mxu0 0.0
        %872 = vmatpush1.msra.mxu0 0.0
        %873 = vmatprep.subr.mxu0 0.0
        %874 = vmatpush1.msra.mxu0 0.0
        %875 = vmatprep.subr.mxu0 0.0
        %876 = vmatpush1.msra.mxu0 0.0
        %877 = vmatprep.subr.mxu0 0.0
        %878 = vmatpush1.msra.mxu0 0.0
        %879 = vmatprep.subr.mxu0 0.0
        %880 = vmatpush1.msra.mxu0 0.0
        %881 = vmatprep.subr.mxu0 0.0
        %882 = vmatpush1.msra.mxu0 0.0
        %883 = vmatprep.subr.mxu0 0.0
        %884 = vmatpush1.msra.mxu0 0.0
        %885 = vmatprep.subr.mxu0 0.0
        %886 = vmatpush1.msra.mxu0 0.0
        %887 = vmatprep.subr.mxu0 0.0
        %888 = vmatpush1.msra.mxu0 0.0
        %889 = vmatprep.subr.mxu0 0.0
        %890 = vmatpush1.msra.mxu0 0.0
        %891 = vmatprep.subr.mxu0 0.0
        %892 = vmatpush1.msra.mxu0 0.0
        %893 = vmatprep.subr.mxu0 0.0
        %894 = vmatpush1.msra.mxu0 0.0
        %895 = vmatprep.subr.mxu0 0.0
        %896 = vmatpush1.msra.mxu0 0.0
        %897 = vmatprep.subr.mxu0 0.0
        %898 = vmatpush1.msra.mxu0 0.0
        %899 = vmatprep.subr.mxu0 0.0
        %900 = vmatpush1.msra.mxu0 0.0
        %901 = vmatprep.subr.mxu0 0.0
        %902 = vmatpush1.msra.mxu0 0.0
        %903 = vmatprep.subr.mxu0 0.0
        %904 = vmatpush1.msra.mxu0 0.0
        %905 = vmatprep.subr.mxu0 0.0
        %906 = vmatpush1.msra.mxu0 0.0
        %907 = vmatprep.subr.mxu0 0.0
        %908 = vmatpush1.msra.mxu0 0.0
        %909 = vmatprep.subr.mxu0 0.0
        %910 = vmatpush1.msra.mxu0 0.0
        %911 = vmatprep.subr.mxu0 0.0
        %912 = vmatpush1.msra.mxu0 0.0
        %913 = vmatprep.subr.mxu0 0.0
        %914 = vmatpush1.msra.mxu0 0.0
        %915 = vmatprep.subr.mxu0 0.0
        %916 = vmatpush1.msra.mxu0 0.0
        %917 = vmatprep.subr.mxu0 0.0
        %918 = vmatpush1.msra.mxu0 0.0
        %919 = vmatprep.subr.mxu0 0.0
        %920 = vmatpush1.msra.mxu0 0.0
        %921 = vmatprep.mubr.f32.mxu0 0.0
        %v922 = vand.u32 %v755, 4294901760
        %923 = vmatmul.mubr.f32.gmra.mrb[0].mxu0 %v922
        %v924 = vpop.f32.mrb[0].mxu0
        %v925 = vadd.f32 %v834, %v924
        %v926 = vpop.f32.mrb[0].mxu0
        %927 = vmatprep.mubr.f32.mxu0 0.0
        %v928 = vand.u32 %v758, 4294901760
        %929 = vmatmul.mubr.f32.gmra.mrb[0].mxu0 %v928
        %v930 = vpop.f32.mrb[0].mxu0
        %v931 = vadd.f32 %v844, %v930
        %v932 = vpop.f32.mrb[0].mxu0
        %933 = vdwg.mxu0
        %934 = vmatprep.subr.mxu0 0.0
        %v935 = vand.u32 %v743, 4294901760
        %v936 = vsub.f32 %v743, %v935
        %937 = vmatpush1.msra.mxu0 %v936
        %938 = vmatprep.subr.mxu0 0.0
        %v939 = vand.u32 %v749, 4294901760
        %v940 = vsub.f32 %v749, %v939
        %941 = vmatpush1.msra.mxu0 %v940
        %942 = vmatprep.subr.mxu0 0.0
        %943 = vmatpush1.msra.mxu0 0.0
        %944 = vmatprep.subr.mxu0 0.0
        %945 = vmatpush1.msra.mxu0 0.0
        %946 = vmatprep.subr.mxu0 0.0
        %947 = vmatpush1.msra.mxu0 0.0
        %948 = vmatprep.subr.mxu0 0.0
        %949 = vmatpush1.msra.mxu0 0.0
        %950 = vmatprep.subr.mxu0 0.0
        %951 = vmatpush1.msra.mxu0 0.0
        %952 = vmatprep.subr.mxu0 0.0
        %953 = vmatpush1.msra.mxu0 0.0
        %954 = vmatprep.subr.mxu0 0.0
        %955 = vmatpush1.msra.mxu0 0.0
        %956 = vmatprep.subr.mxu0 0.0
        %957 = vmatpush1.msra.mxu0 0.0
        %958 = vmatprep.subr.mxu0 0.0
        %959 = vmatpush1.msra.mxu0 0.0
        %960 = vmatprep.subr.mxu0 0.0
        %961 = vmatpush1.msra.mxu0 0.0
        %962 = vmatprep.subr.mxu0 0.0
        %963 = vmatpush1.msra.mxu0 0.0
        %964 = vmatprep.subr.mxu0 0.0
        %965 = vmatpush1.msra.mxu0 0.0
        %966 = vmatprep.subr.mxu0 0.0
        %967 = vmatpush1.msra.mxu0 0.0
        %968 = vmatprep.subr.mxu0 0.0
        %969 = vmatpush1.msra.mxu0 0.0
        %970 = vmatprep.subr.mxu0 0.0
        %971 = vmatpush1.msra.mxu0 0.0
        %972 = vmatprep.subr.mxu0 0.0
        %973 = vmatpush1.msra.mxu0 0.0
        %974 = vmatprep.subr.mxu0 0.0
        %975 = vmatpush1.msra.mxu0 0.0
        %976 = vmatprep.subr.mxu0 0.0
        %977 = vmatpush1.msra.mxu0 0.0
        %978 = vmatprep.subr.mxu0 0.0
        %979 = vmatpush1.msra.mxu0 0.0
        %980 = vmatprep.subr.mxu0 0.0
        %981 = vmatpush1.msra.mxu0 0.0
        %982 = vmatprep.subr.mxu0 0.0
        %983 = vmatpush1.msra.mxu0 0.0
        %984 = vmatprep.subr.mxu0 0.0
        %985 = vmatpush1.msra.mxu0 0.0
        %986 = vmatprep.subr.mxu0 0.0
        %987 = vmatpush1.msra.mxu0 0.0
        %988 = vmatprep.subr.mxu0 0.0
        %989 = vmatpush1.msra.mxu0 0.0
        %990 = vmatprep.subr.mxu0 0.0
        %991 = vmatpush1.msra.mxu0 0.0
        %992 = vmatprep.subr.mxu0 0.0
        %993 = vmatpush1.msra.mxu0 0.0
        %994 = vmatprep.subr.mxu0 0.0
        %995 = vmatpush1.msra.mxu0 0.0
        %996 = vmatprep.subr.mxu0 0.0
        %997 = vmatpush1.msra.mxu0 0.0
        %998 = vmatprep.subr.mxu0 0.0
        %999 = vmatpush1.msra.mxu0 0.0
        %1000 = vmatprep.subr.mxu0 0.0
        %1001 = vmatpush1.msra.mxu0 0.0
        %1002 = vmatprep.mubr.f32.mxu0 0.0
        %v1003 = vand.u32 %v755, 4294901760
        %v1004 = vsub.f32 %v755, %v1003
        %1005 = vmatmul.mubr.f32.gmra.mrb[0].mxu0 %v1004
        %v1006 = vpop.f32.mrb[0].mxu0
        %v1007 = vadd.f32 %v925, %v1006
        %v1008 = vpop.f32.mrb[0].mxu0
        %1009 = vmatprep.mubr.f32.mxu0 0.0
        %v1010 = vand.u32 %v758, 4294901760
        %v1011 = vsub.f32 %v758, %v1010
        %1012 = vmatmul.mubr.f32.gmra.mrb[0].mxu0 %v1011
        %v1013 = vpop.f32.mrb[0].mxu0
        %v1014 = vadd.f32 %v931, %v1013
        %v1015 = vpop.f32.mrb[0].mxu0
        %1016 = vdwg.mxu0
        %1017 = vmatprep.subr.mxu0 0.0
        %v1018 = vand.u32 %v743, 4294901760
        %1019 = vmatpush1.msra.mxu0 %v1018
        %1020 = vmatprep.subr.mxu0 0.0
        %v1021 = vand.u32 %v749, 4294901760
        %1022 = vmatpush1.msra.mxu0 %v1021
        %1023 = vmatprep.subr.mxu0 0.0
        %1024 = vmatpush1.msra.mxu0 0.0
        %1025 = vmatprep.subr.mxu0 0.0
        %1026 = vmatpush1.msra.mxu0 0.0
        %1027 = vmatprep.subr.mxu0 0.0
        %1028 = vmatpush1.msra.mxu0 0.0
        %1029 = vmatprep.subr.mxu0 0.0
        %1030 = vmatpush1.msra.mxu0 0.0
        %1031 = vmatprep.subr.mxu0 0.0
        %1032 = vmatpush1.msra.mxu0 0.0
        %1033 = vmatprep.subr.mxu0 0.0
        %1034 = vmatpush1.msra.mxu0 0.0
        %1035 = vmatprep.subr.mxu0 0.0
        %1036 = vmatpush1.msra.mxu0 0.0
        %1037 = vmatprep.subr.mxu0 0.0
        %1038 = vmatpush1.msra.mxu0 0.0
        %1039 = vmatprep.subr.mxu0 0.0
        %1040 = vmatpush1.msra.mxu0 0.0
        %1041 = vmatprep.subr.mxu0 0.0
        %1042 = vmatpush1.msra.mxu0 0.0
        %1043 = vmatprep.subr.mxu0 0.0
        %1044 = vmatpush1.msra.mxu0 0.0
        %1045 = vmatprep.subr.mxu0 0.0
        %1046 = vmatpush1.msra.mxu0 0.0
        %1047 = vmatprep.subr.mxu0 0.0
        %1048 = vmatpush1.msra.mxu0 0.0
        %1049 = vmatprep.subr.mxu0 0.0
        %1050 = vmatpush1.msra.mxu0 0.0
        %1051 = vmatprep.subr.mxu0 0.0
        %1052 = vmatpush1.msra.mxu0 0.0
        %1053 = vmatprep.subr.mxu0 0.0
        %1054 = vmatpush1.msra.mxu0 0.0
        %1055 = vmatprep.subr.mxu0 0.0
        %1056 = vmatpush1.msra.mxu0 0.0
        %1057 = vmatprep.subr.mxu0 0.0
        %1058 = vmatpush1.msra.mxu0 0.0
        %1059 = vmatprep.subr.mxu0 0.0
        %1060 = vmatpush1.msra.mxu0 0.0
        %1061 = vmatprep.subr.mxu0 0.0
        %1062 = vmatpush1.msra.mxu0 0.0
        %1063 = vmatprep.subr.mxu0 0.0
        %1064 = vmatpush1.msra.mxu0 0.0
        %1065 = vmatprep.subr.mxu0 0.0
        %1066 = vmatpush1.msra.mxu0 0.0
        %1067 = vmatprep.subr.mxu0 0.0
        %1068 = vmatpush1.msra.mxu0 0.0
        %1069 = vmatprep.subr.mxu0 0.0
        %1070 = vmatpush1.msra.mxu0 0.0
        %1071 = vmatprep.subr.mxu0 0.0
        %1072 = vmatpush1.msra.mxu0 0.0
        %1073 = vmatprep.subr.mxu0 0.0
        %1074 = vmatpush1.msra.mxu0 0.0
        %1075 = vmatprep.subr.mxu0 0.0
        %1076 = vmatpush1.msra.mxu0 0.0
        %1077 = vmatprep.subr.mxu0 0.0
        %1078 = vmatpush1.msra.mxu0 0.0
        %1079 = vmatprep.subr.mxu0 0.0
        %1080 = vmatpush1.msra.mxu0 0.0
        %1081 = vmatprep.subr.mxu0 0.0
        %1082 = vmatpush1.msra.mxu0 0.0
        %1083 = vmatprep.mubr.f32.mxu0 0.0
        %v1084 = vand.u32 %v755, 4294901760
        %v1085 = vsub.f32 %v755, %v1084
        %v1086 = vand.u32 %v1085, 4294901760
        %1087 = vmatmul.mubr.f32.gmra.mrb[0].mxu0 %v1086
        %v1088 = vpop.f32.mrb[0].mxu0
        %v1089 = vadd.f32 %v1007, %v1088
        %v1090 = vpop.f32.mrb[0].mxu0
        %1091 = vmatprep.mubr.f32.mxu0 0.0
        %v1092 = vand.u32 %v758, 4294901760
        %v1093 = vsub.f32 %v758, %v1092
        %v1094 = vand.u32 %v1093, 4294901760
        %1095 = vmatmul.mubr.f32.gmra.mrb[0].mxu0 %v1094
        %v1096 = vpop.f32.mrb[0].mxu0
        %v1097 = vadd.f32 %v1014, %v1096
        %v1098 = vpop.f32.mrb[0].mxu0
        %1099 = vdwg.mxu0
        %1100 = vmatprep.subr.mxu0 0.0
        %v1101 = vand.u32 %v743, 4294901760
        %v1102 = vsub.f32 %v743, %v1101
        %v1103 = vand.u32 %v1102, 4294901760
        %1104 = vmatpush1.msra.mxu0 %v1103
        %1105 = vmatprep.subr.mxu0 0.0
        %v1106 = vand.u32 %v749, 4294901760
        %v1107 = vsub.f32 %v749, %v1106
        %v1108 = vand.u32 %v1107, 4294901760
        %1109 = vmatpush1.msra.mxu0 %v1108
        %1110 = vmatprep.subr.mxu0 0.0
        %1111 = vmatpush1.msra.mxu0 0.0
        %1112 = vmatprep.subr.mxu0 0.0
        %1113 = vmatpush1.msra.mxu0 0.0
        %1114 = vmatprep.subr.mxu0 0.0
        %1115 = vmatpush1.msra.mxu0 0.0
        %1116 = vmatprep.subr.mxu0 0.0
        %1117 = vmatpush1.msra.mxu0 0.0
        %1118 = vmatprep.subr.mxu0 0.0
        %1119 = vmatpush1.msra.mxu0 0.0
        %1120 = vmatprep.subr.mxu0 0.0
        %1121 = vmatpush1.msra.mxu0 0.0
        %1122 = vmatprep.subr.mxu0 0.0
        %1123 = vmatpush1.msra.mxu0 0.0
        %1124 = vmatprep.subr.mxu0 0.0
        %1125 = vmatpush1.msra.mxu0 0.0
        %1126 = vmatprep.subr.mxu0 0.0
        %1127 = vmatpush1.msra.mxu0 0.0
        %1128 = vmatprep.subr.mxu0 0.0
        %1129 = vmatpush1.msra.mxu0 0.0
        %1130 = vmatprep.subr.mxu0 0.0
        %1131 = vmatpush1.msra.mxu0 0.0
        %1132 = vmatprep.subr.mxu0 0.0
        %1133 = vmatpush1.msra.mxu0 0.0
        %1134 = vmatprep.subr.mxu0 0.0
        %1135 = vmatpush1.msra.mxu0 0.0
        %1136 = vmatprep.subr.mxu0 0.0
        %1137 = vmatpush1.msra.mxu0 0.0
        %1138 = vmatprep.subr.mxu0 0.0
        %1139 = vmatpush1.msra.mxu0 0.0
        %1140 = vmatprep.subr.mxu0 0.0
        %1141 = vmatpush1.msra.mxu0 0.0
        %1142 = vmatprep.subr.mxu0 0.0
        %1143 = vmatpush1.msra.mxu0 0.0
        %1144 = vmatprep.subr.mxu0 0.0
        %1145 = vmatpush1.msra.mxu0 0.0
        %1146 = vmatprep.subr.mxu0 0.0
        %1147 = vmatpush1.msra.mxu0 0.0
        %1148 = vmatprep.subr.mxu0 0.0
        %1149 = vmatpush1.msra.mxu0 0.0
        %1150 = vmatprep.subr.mxu0 0.0
        %1151 = vmatpush1.msra.mxu0 0.0
        %1152 = vmatprep.subr.mxu0 0.0
        %1153 = vmatpush1.msra.mxu0 0.0
        %1154 = vmatprep.subr.mxu0 0.0
        %1155 = vmatpush1.msra.mxu0 0.0
        %1156 = vmatprep.subr.mxu0 0.0
        %1157 = vmatpush1.msra.mxu0 0.0
        %1158 = vmatprep.subr.mxu0 0.0
        %1159 = vmatpush1.msra.mxu0 0.0
        %1160 = vmatprep.subr.mxu0 0.0
        %1161 = vmatpush1.msra.mxu0 0.0
        %1162 = vmatprep.subr.mxu0 0.0
        %1163 = vmatpush1.msra.mxu0 0.0
        %1164 = vmatprep.subr.mxu0 0.0
        %1165 = vmatpush1.msra.mxu0 0.0
        %1166 = vmatprep.subr.mxu0 0.0
        %1167 = vmatpush1.msra.mxu0 0.0
        %1168 = vmatprep.subr.mxu0 0.0
        %1169 = vmatpush1.msra.mxu0 0.0
        %1170 = vmatprep.mubr.f32.mxu0 0.0
        %v1171 = vand.u32 %v755, 4294901760
        %1172 = vmatmul.mubr.f32.gmra.mrb[0].mxu0 %v1171
        %v1173 = vpop.f32.mrb[0].mxu0
        %v1174 = vadd.f32 %v1089, %v1173
        %v1175 = vpop.f32.mrb[0].mxu0
        %1176 = vmatprep.mubr.f32.mxu0 0.0
        %v1177 = vand.u32 %v758, 4294901760
        %1178 = vmatmul.mubr.f32.gmra.mrb[0].mxu0 %v1177
        %v1179 = vpop.f32.mrb[0].mxu0
        %v1180 = vadd.f32 %v1097, %v1179
        %v1181 = vpop.f32.mrb[0].mxu0
        %1182 = vdwg.mxu0
        %1183 = vmatprep.subr.mxu0 0.0
        %v1184 = vand.u32 %v743, 4294901760
        %1185 = vmatpush1.msra.mxu0 %v1184
        %1186 = vmatprep.subr.mxu0 0.0
        %v1187 = vand.u32 %v749, 4294901760
        %1188 = vmatpush1.msra.mxu0 %v1187
        %1189 = vmatprep.subr.mxu0 0.0
        %1190 = vmatpush1.msra.mxu0 0.0
        %1191 = vmatprep.subr.mxu0 0.0
        %1192 = vmatpush1.msra.mxu0 0.0
        %1193 = vmatprep.subr.mxu0 0.0
        %1194 = vmatpush1.msra.mxu0 0.0
        %1195 = vmatprep.subr.mxu0 0.0
        %1196 = vmatpush1.msra.mxu0 0.0
        %1197 = vmatprep.subr.mxu0 0.0
        %1198 = vmatpush1.msra.mxu0 0.0
        %1199 = vmatprep.subr.mxu0 0.0
        %1200 = vmatpush1.msra.mxu0 0.0
        %1201 = vmatprep.subr.mxu0 0.0
        %1202 = vmatpush1.msra.mxu0 0.0
        %1203 = vmatprep.subr.mxu0 0.0
        %1204 = vmatpush1.msra.mxu0 0.0
        %1205 = vmatprep.subr.mxu0 0.0
        %1206 = vmatpush1.msra.mxu0 0.0
        %1207 = vmatprep.subr.mxu0 0.0
        %1208 = vmatpush1.msra.mxu0 0.0
        %1209 = vmatprep.subr.mxu0 0.0
        %1210 = vmatpush1.msra.mxu0 0.0
        %1211 = vmatprep.subr.mxu0 0.0
        %1212 = vmatpush1.msra.mxu0 0.0
        %1213 = vmatprep.subr.mxu0 0.0
        %1214 = vmatpush1.msra.mxu0 0.0
        %1215 = vmatprep.subr.mxu0 0.0
        %1216 = vmatpush1.msra.mxu0 0.0
        %1217 = vmatprep.subr.mxu0 0.0
        %1218 = vmatpush1.msra.mxu0 0.0
        %1219 = vmatprep.subr.mxu0 0.0
        %1220 = vmatpush1.msra.mxu0 0.0
        %1221 = vmatprep.subr.mxu0 0.0
        %1222 = vmatpush1.msra.mxu0 0.0
        %1223 = vmatprep.subr.mxu0 0.0
        %1224 = vmatpush1.msra.mxu0 0.0
        %1225 = vmatprep.subr.mxu0 0.0
        %1226 = vmatpush1.msra.mxu0 0.0
        %1227 = vmatprep.subr.mxu0 0.0
        %1228 = vmatpush1.msra.mxu0 0.0
        %1229 = vmatprep.subr.mxu0 0.0
        %1230 = vmatpush1.msra.mxu0 0.0
        %1231 = vmatprep.subr.mxu0 0.0
        %1232 = vmatpush1.msra.mxu0 0.0
        %1233 = vmatprep.subr.mxu0 0.0
        %1234 = vmatpush1.msra.mxu0 0.0
        %1235 = vmatprep.subr.mxu0 0.0
        %1236 = vmatpush1.msra.mxu0 0.0
        %1237 = vmatprep.subr.mxu0 0.0
        %1238 = vmatpush1.msra.mxu0 0.0
        %1239 = vmatprep.subr.mxu0 0.0
        %1240 = vmatpush1.msra.mxu0 0.0
        %1241 = vmatprep.subr.mxu0 0.0
        %1242 = vmatpush1.msra.mxu0 0.0
        %1243 = vmatprep.subr.mxu0 0.0
        %1244 = vmatpush1.msra.mxu0 0.0
        %1245 = vmatprep.subr.mxu0 0.0
        %1246 = vmatpush1.msra.mxu0 0.0
        %1247 = vmatprep.subr.mxu0 0.0
        %1248 = vmatpush1.msra.mxu0 0.0
        %1249 = vmatprep.mubr.f32.mxu0 0.0
        %v1250 = vand.u32 %v755, 4294901760
        %1251 = vmatmul.mubr.f32.gmra.mrb[0].mxu0 %v1250
        %v1252 = vpop.f32.mrb[0].mxu0
        %v1253 = vadd.f32 %v1174, %v1252
        %v1254 = vpop.f32.mrb[0].mxu0
        %1255 = vmatprep.mubr.f32.mxu0 0.0
        %v1256 = vand.u32 %v758, 4294901760
        %1257 = vmatmul.mubr.f32.gmra.mrb[0].mxu0 %v1256
        %v1258 = vpop.f32.mrb[0].mxu0
        %v1259 = vadd.f32 %v1180, %v1258
        %v1260 = vpop.f32.mrb[0].mxu0
        %1261 = vdwg.mxu0
        %1262 = vst.msk [vmem:[%s238] sm:$0xff] %vm243, %v1253
        %1263 = vst.msk [vmem:[%s238 + $0x8] sm:$0xff] %vm243, %v1259
        %s1264 = sand.u32 %s116, 1
        %s1265 = scalar_lea.sflag [#allocation4], %s1264
        %s1266 = sand.u32 %s116, 1
        %s1267 = smul.addr %s1266, 16
        %s1268 = scalar_lea.vmem [#allocation8], %s1267
        // Predicated region
        $region45: #{idcst2.1} parent=31 // pred_check
          %p1269 = pneg %p126
        $region46: #{idcst2.1} parent=31 // pred_check_branch
          %1271 = sbr.rel (%p1269) target = $region48
        $region47: #{idcst2.1} parent=31 // pred_region
          %s1273 = ssub.s32 256, 256
          %1274 = vsyncadd %s1265, %s1273
          %s1275 = smul.addr %s25, 2
          %s1276 = sadd.s32 %s26, %s1275
          %s1277 = smul.addr %s1276, 128
          %s1278 = scalar_lea.hbm %s3, %s1277
          %s1279 = sshll.u32 %s1268, 4
          %s1280 = int_to_ptr.vmem [resolvable:$true] %s1279
          %1285 = dma.vmem_to_hbm [thread:$0]  %s1280, 256, %s1278, %s1265, 128, 128, 8
        $region48: #{idcst2.1} parent=31 // pred_fallthru
          _
      $region32: #{idcst2.1} parent=5 // pred_fallthru
        _
      %p1286 = scmp.le.s32.totalorder 2, %s16
      // Predicated region
      $region49: #{idcst2.1} parent=5 // pred_check
        %p1287 = pneg %p1286
      $region50: #{idcst2.1} parent=5 // pred_check_branch
        %1289 = sbr.rel (%p1287) target = $region52
      $region51: #{idcst2.1} parent=5 // pred_region
        %s1290 = ssub.s32 %s16, 2
        // Predicated region
        $region53: #{idcst2.1} parent=51 // pred_check
          %p1291 = pneg %p132
        $region54: #{idcst2.1} parent=51 // pred_check_branch
          %1293 = sbr.rel (%p1291) target = $region56
        $region55: #{idcst2.1} parent=51 // pred_region
          %s1294 = sand.u32 %s117, 1
          %s1295 = scalar_lea.sflag [#allocation4], %s1294
          %s1296 = sand.u32 %s117, 1
          %s1297 = smul.addr %s1296, 16
          %s1298 = scalar_lea.vmem [#allocation8], %s1297
          %1299 = dma.done %s1295, 256
        $region56: #{idcst2.1} parent=51 // pred_fallthru
          _
      $region52: #{idcst2.1} parent=5 // pred_fallthru
        _
    $region6: #{idcst2.1} parent=1 // loop_footer
      %s20 = sadd.s32 1, %s16
    $region7: #{idcst2.1} parent=1 // loop_footer_branch
      %15 = sbr.rel target = $region3
    $region8: #{idcst2.1} parent=1 // loop_exit
      _
    %1300 = vsyncpa [#allocation3], 1
    %s1301 = scalar_lea.sflag [#allocation3], 1
    %1302 = vsyncpa %s1301, 1
    %1303 = vsyncpa [#allocation6], 1
    %1304 = vsyncpa [#allocation4], 1
    %s1305 = scalar_lea.sflag [#allocation4], 1
    %1306 = vsyncpa %s1305, 1

</llo_original>
